<compile_context>
chip_gen: v7x
topology: tpu7x:2x2x1
jax: 0.10.0
libtpu: 0.0.40
codegen_flags: <defaults>
</compile_context>

<pallas_src>
import functools

import jax
import jax.numpy as jnp
from jax import lax
from jax.experimental import pallas as pl
from jax.experimental.pallas import tpu as pltpu

_LANES = 128            # complex elements per row of the 2-D working view
_ROW_F32 = 2 * _LANES   # interleaved float32 values per row (re, im pairs)
_TILE_ROWS = 2048       # rows per grid step: 2 MiB in + 1 MiB out per block


def _probe_complex_bitcast() -> bool:
    """True iff complex64 -> float32 bitcast (zero-copy re/im view) is supported."""
    try:
        y = lax.bitcast_convert_type(jnp.array([1.0 + 2.0j], jnp.complex64),
                                     jnp.float32)
        return (y.shape == (1, 2)
                and bool(jnp.all(y == jnp.array([[1.0, 2.0]], jnp.float32))))
    except Exception:
        return False


_HAS_COMPLEX_BITCAST = _probe_complex_bitcast()


def _as_interleaved_f32(x: jax.Array) -> jax.Array:
    """View complex64 x as float32 with trailing [re, im] dim (free when bitcast works)."""
    if _HAS_COMPLEX_BITCAST:
        return lax.bitcast_convert_type(x, jnp.float32)          # (..., 2), zero-copy
    # Fallback: a single fused XLA pass producing the same interleaved layout.
    return jnp.stack([jnp.real(x), jnp.imag(x)], axis=-1)


def _modsigmoid_kernel(x_ref, o_ref, *, alpha: float):
    # x_ref: (tile_rows, 256) float32, rows of interleaved [re, im, re, im, ...]
    # o_ref: (tile_rows, 128) float32
    x = x_ref[...]

    # Constant selection matrix S (256, 128): S[2j, j] = alpha, S[2j+1, j] = 1-alpha.
    # x @ S = alpha*Re + (1-alpha)*Im, deinterleaved and compacted to 128 lanes,
    # in one MXU op (building S costs ~30 VPU cycles per step -- negligible).
    r = lax.broadcasted_iota(jnp.int32, (_ROW_F32, _LANES), 0)
    c = lax.broadcasted_iota(jnp.int32, (_ROW_F32, _LANES), 1)
    sel = jnp.where(r == 2 * c, jnp.float32(alpha),
                    jnp.where(r == 2 * c + 1, jnp.float32(1.0 - alpha),
                              jnp.float32(0.0)))

    z = jnp.dot(x, sel, preferred_element_type=jnp.float32,
                precision=lax.Precision.HIGHEST)   # keep f32-exact on the MXU
    o_ref[...] = jax.nn.sigmoid(z)                 # EUP; hidden under the DMA bound


def _run_kernel(x2d: jax.Array, alpha: float) -> jax.Array:
    m = x2d.shape[0]
    # Biggest tile that comfortably fits every generation's scoped-VMEM default
    # (v5e 16 MiB / v6e 32 MiB / v7x 32 MiB): ~6-7 MiB double-buffered total.
    tile_rows = _TILE_ROWS if m > _TILE_ROWS else m
    grid = (pl.cdiv(m, tile_rows),)                # ragged last block masked by Pallas

    kernel = functools.partial(_modsigmoid_kernel, alpha=float(alpha))
    return pl.pallas_call(
        kernel,
        out_shape=jax.ShapeDtypeStruct((m, _LANES), jnp.float32),
        grid=grid,
        in_specs=[pl.BlockSpec((tile_rows, _ROW_F32), lambda i: (i, 0))],
        out_specs=pl.BlockSpec((tile_rows, _LANES), lambda i: (i, 0)),
        compiler_params=pltpu.CompilerParams(
            # Independent row blocks: shards the grid across both v7x TensorCores.
            dimension_semantics=("parallel",),
        ),
    )(x2d)


@functools.partial(jax.jit, static_argnames=("alpha",))
def modsigmoid(x: jax.Array, alpha: float = 0.5) -> jax.Array:
    """Pallas TPU forward of torchcomplex modSigmoid: sigmoid(a*Re(x) + (1-a)*Im(x))."""
    assert 0.0 <= alpha <= 1.0, "alpha must be between 0 and 1"   # matches module ctor
    if not jnp.issubdtype(x.dtype, jnp.complexfloating):
        raise TypeError("modsigmoid expects a complex input")
    if x.dtype != jnp.complex64:
        # TPU has no f64 vector path; compute complex128 inputs in f32 precision.
        x = x.astype(jnp.complex64)

    orig_shape = x.shape
    n = x.size
    flat = _as_interleaved_f32(x).reshape(-1)      # (2n,) interleaved; reshape is free

    m = pl.cdiv(n, _LANES)                         # rows of the (m, 256) working view
    needs_pad = (m * _LANES) != n
    if needs_pad:
        # Rare path (element count not a multiple of 128): one pad pass + one slice.
        flat = jnp.pad(flat, (0, m * _ROW_F32 - flat.shape[0]))
    x2d = flat.reshape(m, _ROW_F32)

    out2d = _run_kernel(x2d, alpha)                # (m, 128) float32, lane-dense
    out = out2d.reshape(-1)
    if needs_pad:
        out = out[:n]
    return out.reshape(orig_shape)


def modsigmoid_ref(x: jax.Array, alpha: float = 0.5) -> jax.Array:
    return jax.nn.sigmoid(alpha * jnp.real(x) + (1.0 - alpha) * jnp.imag(x))


if __name__ == "__main__":
    key = jax.random.PRNGKey(0)
    kr, ki = jax.random.split(key)
    B, C, H, W = 2, 4, 16, 16                      # NCHW complex64 input
    xr = jax.random.normal(kr, (B, C, H, W), dtype=jnp.float32)
    xi = jax.random.normal(ki, (B, C, H, W), dtype=jnp.float32)
    x = (xr + 1j * xi).astype(jnp.complex64)

    alpha = 0.5
    out = jax.block_until_ready(modsigmoid(x, alpha=alpha))
    ref = modsigmoid_ref(x, alpha=alpha)

    assert out.shape == (B, C, H, W)
    assert out.dtype == jnp.float32
    assert jnp.allclose(out, ref, atol=1e-5, rtol=1e-5), \
        f"max abs err = {float(jnp.max(jnp.abs(out - ref)))}"
    print("KERNEL_OK")
</pallas_src>

<mosaic_0001>
module attributes {stable_mosaic.version = 11 : i64} {
  func.func @_modsigmoid_kernel(%arg0: i32, %arg1: memref<16x256xf32, #tpu.memory_space<vmem>>, %arg2: memref<16x128xf32, #tpu.memory_space<vmem>>) attributes {dimension_semantics = [#tpu.dimension_semantics<parallel>], iteration_bounds = array<i64: 1>, scalar_prefetch = 0 : i64, scratch_operands = 0 : i64, tpu.core_type = #tpu.core_type<tc>, window_params = [{transform_indices = @transform_0, window_bounds = array<i64: 16, 256>}, {transform_indices = @transform_1, window_bounds = array<i64: 16, 128>}]} {
    %c0 = arith.constant 0 : index
    %c0_0 = arith.constant 0 : index
    %0 = vector.load %arg1[%c0, %c0_0] : memref<16x256xf32, #tpu.memory_space<vmem>>, vector<16x256xf32>
    %1 = tpu.iota {dimensions = array<i32: 0>} : vector<256x128xi32>
    %2 = tpu.iota {dimensions = array<i32: 1>} : vector<256x128xi32>
    %c2_i32 = arith.constant 2 : i32
    %3 = vector.broadcast %c2_i32 : i32 to vector<256x128xi32>
    %4 = arith.muli %3, %2 : vector<256x128xi32>
    %5 = arith.cmpi eq, %1, %4 : vector<256x128xi32>
    %c2_i32_1 = arith.constant 2 : i32
    %6 = vector.broadcast %c2_i32_1 : i32 to vector<256x128xi32>
    %7 = arith.muli %6, %2 : vector<256x128xi32>
    %c1_i32 = arith.constant 1 : i32
    %8 = vector.broadcast %c1_i32 : i32 to vector<256x128xi32>
    %9 = arith.addi %7, %8 : vector<256x128xi32>
    %10 = arith.cmpi eq, %1, %9 : vector<256x128xi32>
    %cst = arith.constant 5.000000e-01 : f32
    %cst_2 = arith.constant 0.000000e+00 : f32
    %11 = vector.broadcast %cst : f32 to vector<256x128xf32>
    %12 = vector.broadcast %cst_2 : f32 to vector<256x128xf32>
    %13 = arith.select %10, %11, %12 : vector<256x128xi1>, vector<256x128xf32>
    %cst_3 = arith.constant 5.000000e-01 : f32
    %14 = vector.broadcast %cst_3 : f32 to vector<256x128xf32>
    %15 = arith.select %5, %14, %13 : vector<256x128xi1>, vector<256x128xf32>
    %cst_4 = arith.constant dense<0.000000e+00> : vector<16x128xf32>
    %16 = tpu.matmul %0, %15, %cst_4 {dimension_numbers = #tpu.dot_dimension_numbers<[1], [0], [0], [1], [0, 0, 1, 1], [], []>, precision = #tpu.contract_precision<fp32>} : vector<16x256xf32>, vector<256x128xf32>, vector<16x128xf32> -> vector<16x128xf32>
    %17 = arith.negf %16 : vector<16x128xf32>
    %18 = math.exp %17 : vector<16x128xf32>
    %cst_5 = arith.constant 1.000000e+00 : f32
    %19 = vector.broadcast %cst_5 : f32 to vector<16x128xf32>
    %20 = arith.addf %19, %18 : vector<16x128xf32>
    %21 = arith.divf %19, %20 : vector<16x128xf32>
    %c0_6 = arith.constant 0 : index
    %c0_7 = arith.constant 0 : index
    %22 = vector.load %arg2[%c0_6, %c0_7] : memref<16x128xf32, #tpu.memory_space<vmem>>, vector<16x128xf32>
    tpu.vector_store %arg2[%c0_6, %c0_7], %21 {strides = array<i32>} : memref<16x128xf32, #tpu.memory_space<vmem>>, vector<16x128xf32>,
    return
  }
  func.func @transform_0(%arg0: i32) -> (i32, i32) {
    %c0_i32 = arith.constant 0 : i32
    %c0_i32_0 = arith.constant 0 : i32
    return %arg0, %c0_i32 : i32, i32
  }
  func.func @transform_1(%arg0: i32) -> (i32, i32) {
    %c0_i32 = arith.constant 0 : i32
    %c0_i32_0 = arith.constant 0 : i32
    return %arg0, %c0_i32 : i32, i32
  }
}

</mosaic_0001>

<llo_original>
// kernel: custom-call.1
$region0: #{custom-call.1}
  %s0 = inlined_call_operand.hbm [shape: c64[2,4,16,16], index: 0, kind: input, shape index: {}]
  %s1 = inlined_call_operand.vmem [shape: f32[2,4,16,16], index: 1, kind: output, shape index: {}]
  %s2 = scalar_lea.hbm %s0, 2048
  $region1: #{custom-call.1} parent=0
    #allocation0 [shape = 's32[1]{0}', space=sflag, size = 0x4, scoped, tag = 'scoped memory for custom-call.1']
    %3 = vsyncpa [#allocation0], 0
    %s4 = sshll.u32 %s1, 4
    %s5 = int_to_ptr.vmem [resolvable:$true] %s4
    %7 = dma.hbm_to_vmem [thread:$0]  %s2, 2048, %s5, [#allocation0]
    %8 = dma.done [#allocation0], 2048
    %9 = vsyncpa [#allocation0], 1

// kernel: custom-call
$region0: #{custom-call}
  %s0 = inlined_call_operand.hbm [shape: c64[2,4,16,16], index: 0, kind: input, shape index: {}]
  %s1 = inlined_call_operand.vmem [shape: f32[2,4,16,16], index: 1, kind: output, shape index: {}]
  $region1: #{custom-call} parent=0
    #allocation0 [shape = 's32[1]{0}', space=sflag, size = 0x4, scoped, tag = 'scoped memory for custom-call']
    %2 = vsyncpa [#allocation0], 0
    %s3 = sshll.u32 %s1, 4
    %s4 = int_to_ptr.vmem [resolvable:$true] %s3
    %6 = dma.hbm_to_vmem [thread:$0]  %s0, 2048, %s4, [#allocation0]
    %7 = dma.done [#allocation0], 2048
    %8 = vsyncpa [#allocation0], 1

// kernel: modsigmoid.1
$region0: #{modsigmoid.1}
  #allocation0 [shape = 'u32[]', space=smem, size = 0x4, offset = 0x4, fixed_abs, tag = 'smem constant byte address 0x4 - core index']
  #allocation1 [shape = 'u32[144,128]{1,0:T(1,128)}', space=vmem, size = 0x12000, scoped, tag = 'internal scratch']
  %s0 = inlined_call_operand.vmem [shape: f32[16,256], index: 0, kind: input, shape index: {}]
  %s1 = inlined_call_operand.vmem [shape: f32[16,128], index: 1, kind: output, shape index: {}]
  %s2 = sld [smem:[#allocation0]]
  $region14: #{modsigmoid.1} parent=0
    _
  %s4 = ssub.s32 1, %s2
  %s5 = scalar_select 0, %s4, %s2
  // Predicated region
  $region2: #{modsigmoid.1} parent=0 // pred_check
    _
  $region3: #{modsigmoid.1} parent=0 // pred_check_branch
    %7 = sbr.rel (0) target = $region5
  $region4: #{modsigmoid.1} parent=0 // pred_region
    _
  $region5: #{modsigmoid.1} parent=0 // pred_fallthru
    _
  %v8 = vld [vmem:[%s0] sm:$0xff]
  %v9 = vld [vmem:[%s0 + $0x8] sm:$0xff]
  %v10 = vld [vmem:[%s0 + $0x10] sm:$0xff]
  %v11 = vld [vmem:[%s0 + $0x18] sm:$0xff]
  %v12 = vlaneseq
  %v13 = vshrl.u32 %v12, 7
  %v14 = vadd.s32 %v13, 8
  %v15 = vadd.s32 %v13, 16
  %v16 = vadd.s32 %v13, 24
  %v17 = vadd.s32 %v13, 32
  %v18 = vadd.s32 %v13, 40
  %v19 = vadd.s32 %v13, 48
  %v20 = vadd.s32 %v13, 56
  %v21 = vadd.s32 %v13, 64
  %v22 = vadd.s32 %v13, 72
  %v23 = vadd.s32 %v13, 80
  %v24 = vadd.s32 %v13, 88
  %v25 = vadd.s32 %v13, 96
  %v26 = vadd.s32 %v13, 104
  %v27 = vadd.s32 %v13, 112
  %v28 = vadd.s32 %v13, 120
  %v29 = vadd.s32 %v13, 128
  %v30 = vadd.s32 %v13, 136
  %v31 = vadd.s32 %v13, 144
  %v32 = vadd.s32 %v13, 152
  %v33 = vadd.s32 %v13, 160
  %v34 = vadd.s32 %v13, 168
  %v35 = vadd.s32 %v13, 176
  %v36 = vadd.s32 %v13, 184
  %v37 = vadd.s32 %v13, 192
  %v38 = vadd.s32 %v13, 200
  %v39 = vadd.s32 %v13, 208
  %v40 = vadd.s32 %v13, 216
  %v41 = vadd.s32 %v13, 224
  %v42 = vadd.s32 %v13, 232
  %v43 = vadd.s32 %v13, 240
  %v44 = vadd.s32 %v13, 248
  %v45 = vlaneseq
  %v46 = vand.u32 %v45, 127
  %v47 = vmul.u32 %v46, 2
  %vm48 = vcmp.eq.s32.totalorder %v13, %v47
  %vm49 = vcmp.eq.s32.totalorder %v14, %v47
  %vm50 = vcmp.eq.s32.totalorder %v15, %v47
  %vm51 = vcmp.eq.s32.totalorder %v16, %v47
  %vm52 = vcmp.eq.s32.totalorder %v17, %v47
  %vm53 = vcmp.eq.s32.totalorder %v18, %v47
  %vm54 = vcmp.eq.s32.totalorder %v19, %v47
  %vm55 = vcmp.eq.s32.totalorder %v20, %v47
  %vm56 = vcmp.eq.s32.totalorder %v21, %v47
  %vm57 = vcmp.eq.s32.totalorder %v22, %v47
  %vm58 = vcmp.eq.s32.totalorder %v23, %v47
  %vm59 = vcmp.eq.s32.totalorder %v24, %v47
  %vm60 = vcmp.eq.s32.totalorder %v25, %v47
  %vm61 = vcmp.eq.s32.totalorder %v26, %v47
  %vm62 = vcmp.eq.s32.totalorder %v27, %v47
  %vm63 = vcmp.eq.s32.totalorder %v28, %v47
  %vm64 = vcmp.eq.s32.totalorder %v29, %v47
  %vm65 = vcmp.eq.s32.totalorder %v30, %v47
  %vm66 = vcmp.eq.s32.totalorder %v31, %v47
  %vm67 = vcmp.eq.s32.totalorder %v32, %v47
  %vm68 = vcmp.eq.s32.totalorder %v33, %v47
  %vm69 = vcmp.eq.s32.totalorder %v34, %v47
  %vm70 = vcmp.eq.s32.totalorder %v35, %v47
  %vm71 = vcmp.eq.s32.totalorder %v36, %v47
  %vm72 = vcmp.eq.s32.totalorder %v37, %v47
  %vm73 = vcmp.eq.s32.totalorder %v38, %v47
  %vm74 = vcmp.eq.s32.totalorder %v39, %v47
  %vm75 = vcmp.eq.s32.totalorder %v40, %v47
  %vm76 = vcmp.eq.s32.totalorder %v41, %v47
  %vm77 = vcmp.eq.s32.totalorder %v42, %v47
  %vm78 = vcmp.eq.s32.totalorder %v43, %v47
  %vm79 = vcmp.eq.s32.totalorder %v44, %v47
  %v80 = vadd.s32 %v47, 1
  %vm81 = vcmp.eq.s32.totalorder %v13, %v80
  %vm82 = vcmp.eq.s32.totalorder %v14, %v80
  %vm83 = vcmp.eq.s32.totalorder %v15, %v80
  %vm84 = vcmp.eq.s32.totalorder %v16, %v80
  %vm85 = vcmp.eq.s32.totalorder %v17, %v80
  %vm86 = vcmp.eq.s32.totalorder %v18, %v80
  %vm87 = vcmp.eq.s32.totalorder %v19, %v80
  %vm88 = vcmp.eq.s32.totalorder %v20, %v80
  %vm89 = vcmp.eq.s32.totalorder %v21, %v80
  %vm90 = vcmp.eq.s32.totalorder %v22, %v80
  %vm91 = vcmp.eq.s32.totalorder %v23, %v80
  %vm92 = vcmp.eq.s32.totalorder %v24, %v80
  %vm93 = vcmp.eq.s32.totalorder %v25, %v80
  %vm94 = vcmp.eq.s32.totalorder %v26, %v80
  %vm95 = vcmp.eq.s32.totalorder %v27, %v80
  %vm96 = vcmp.eq.s32.totalorder %v28, %v80
  %vm97 = vcmp.eq.s32.totalorder %v29, %v80
  %vm98 = vcmp.eq.s32.totalorder %v30, %v80
  %vm99 = vcmp.eq.s32.totalorder %v31, %v80
  %vm100 = vcmp.eq.s32.totalorder %v32, %v80
  %vm101 = vcmp.eq.s32.totalorder %v33, %v80
  %vm102 = vcmp.eq.s32.totalorder %v34, %v80
  %vm103 = vcmp.eq.s32.totalorder %v35, %v80
  %vm104 = vcmp.eq.s32.totalorder %v36, %v80
  %vm105 = vcmp.eq.s32.totalorder %v37, %v80
  %vm106 = vcmp.eq.s32.totalorder %v38, %v80
  %vm107 = vcmp.eq.s32.totalorder %v39, %v80
  %vm108 = vcmp.eq.s32.totalorder %v40, %v80
  %vm109 = vcmp.eq.s32.totalorder %v41, %v80
  %vm110 = vcmp.eq.s32.totalorder %v42, %v80
  %vm111 = vcmp.eq.s32.totalorder %v43, %v80
  %vm112 = vcmp.eq.s32.totalorder %v44, %v80
  %v113 = vsel %vm81, 0.5, 0.0
  %v114 = vsel %vm82, 0.5, 0.0
  %v115 = vsel %vm83, 0.5, 0.0
  %v116 = vsel %vm84, 0.5, 0.0
  %v117 = vsel %vm85, 0.5, 0.0
  %v118 = vsel %vm86, 0.5, 0.0
  %v119 = vsel %vm87, 0.5, 0.0
  %v120 = vsel %vm88, 0.5, 0.0
  %v121 = vsel %vm89, 0.5, 0.0
  %v122 = vsel %vm90, 0.5, 0.0
  %v123 = vsel %vm91, 0.5, 0.0
  %v124 = vsel %vm92, 0.5, 0.0
  %v125 = vsel %vm93, 0.5, 0.0
  %v126 = vsel %vm94, 0.5, 0.0
  %v127 = vsel %vm95, 0.5, 0.0
  %v128 = vsel %vm96, 0.5, 0.0
  %v129 = vsel %vm97, 0.5, 0.0
  %v130 = vsel %vm98, 0.5, 0.0
  %v131 = vsel %vm99, 0.5, 0.0
  %v132 = vsel %vm100, 0.5, 0.0
  %v133 = vsel %vm101, 0.5, 0.0
  %v134 = vsel %vm102, 0.5, 0.0
  %v135 = vsel %vm103, 0.5, 0.0
  %v136 = vsel %vm104, 0.5, 0.0
  %v137 = vsel %vm105, 0.5, 0.0
  %v138 = vsel %vm106, 0.5, 0.0
  %v139 = vsel %vm107, 0.5, 0.0
  %v140 = vsel %vm108, 0.5, 0.0
  %v141 = vsel %vm109, 0.5, 0.0
  %v142 = vsel %vm110, 0.5, 0.0
  %v143 = vsel %vm111, 0.5, 0.0
  %v144 = vsel %vm112, 0.5, 0.0
  %v145 = vsel %vm48, 0.5, %v113
  %v146 = vsel %vm49, 0.5, %v114
  %v147 = vsel %vm50, 0.5, %v115
  %v148 = vsel %vm51, 0.5, %v116
  %v149 = vsel %vm52, 0.5, %v117
  %v150 = vsel %vm53, 0.5, %v118
  %v151 = vsel %vm54, 0.5, %v119
  %v152 = vsel %vm55, 0.5, %v120
  %v153 = vsel %vm56, 0.5, %v121
  %v154 = vsel %vm57, 0.5, %v122
  %v155 = vsel %vm58, 0.5, %v123
  %v156 = vsel %vm59, 0.5, %v124
  %v157 = vsel %vm60, 0.5, %v125
  %v158 = vsel %vm61, 0.5, %v126
  %v159 = vsel %vm62, 0.5, %v127
  %v160 = vsel %vm63, 0.5, %v128
  %v161 = vsel %vm64, 0.5, %v129
  %v162 = vsel %vm65, 0.5, %v130
  %v163 = vsel %vm66, 0.5, %v131
  %v164 = vsel %vm67, 0.5, %v132
  %v165 = vsel %vm68, 0.5, %v133
  %v166 = vsel %vm69, 0.5, %v134
  %v167 = vsel %vm70, 0.5, %v135
  %v168 = vsel %vm71, 0.5, %v136
  %v169 = vsel %vm72, 0.5, %v137
  %v170 = vsel %vm73, 0.5, %v138
  %v171 = vsel %vm74, 0.5, %v139
  %v172 = vsel %vm75, 0.5, %v140
  %v173 = vsel %vm76, 0.5, %v141
  %v174 = vsel %vm77, 0.5, %v142
  %v175 = vsel %vm78, 0.5, %v143
  %v176 = vsel %vm79, 0.5, %v144
  %177 = vmatprep.subr.mxu0 0.0
  %178 = vmatpush1.msra.mxu0 %v145
  %179 = vmatprep.subr.mxu0 0.0
  %180 = vmatpush1.msra.mxu0 %v146
  %181 = vmatprep.subr.mxu0 0.0
  %182 = vmatpush1.msra.mxu0 %v147
  %183 = vmatprep.subr.mxu0 0.0
  %184 = vmatpush1.msra.mxu0 %v148
  %185 = vmatprep.subr.mxu0 0.0
  %186 = vmatpush1.msra.mxu0 %v149
  %187 = vmatprep.subr.mxu0 0.0
  %188 = vmatpush1.msra.mxu0 %v150
  %189 = vmatprep.subr.mxu0 0.0
  %190 = vmatpush1.msra.mxu0 %v151
  %191 = vmatprep.subr.mxu0 0.0
  %192 = vmatpush1.msra.mxu0 %v152
  %193 = vmatprep.subr.mxu0 0.0
  %194 = vmatpush1.msra.mxu0 %v153
  %195 = vmatprep.subr.mxu0 0.0
  %196 = vmatpush1.msra.mxu0 %v154
  %197 = vmatprep.subr.mxu0 0.0
  %198 = vmatpush1.msra.mxu0 %v155
  %199 = vmatprep.subr.mxu0 0.0
  %200 = vmatpush1.msra.mxu0 %v156
  %201 = vmatprep.subr.mxu0 0.0
  %202 = vmatpush1.msra.mxu0 %v157
  %203 = vmatprep.subr.mxu0 0.0
  %204 = vmatpush1.msra.mxu0 %v158
  %205 = vmatprep.subr.mxu0 0.0
  %206 = vmatpush1.msra.mxu0 %v159
  %207 = vmatprep.subr.mxu0 0.0
  %208 = vmatpush1.msra.mxu0 %v160
  %209 = vmatprep.subr.mxu0 0.0
  %210 = vmatpush1.msra.mxu0 %v161
  %211 = vmatprep.subr.mxu0 0.0
  %212 = vmatpush1.msra.mxu0 %v162
  %213 = vmatprep.subr.mxu0 0.0
  %214 = vmatpush1.msra.mxu0 %v163
  %215 = vmatprep.subr.mxu0 0.0
  %216 = vmatpush1.msra.mxu0 %v164
  %217 = vmatprep.subr.mxu0 0.0
  %218 = vmatpush1.msra.mxu0 %v165
  %219 = vmatprep.subr.mxu0 0.0
  %220 = vmatpush1.msra.mxu0 %v166
  %221 = vmatprep.subr.mxu0 0.0
  %222 = vmatpush1.msra.mxu0 %v167
  %223 = vmatprep.subr.mxu0 0.0
  %224 = vmatpush1.msra.mxu0 %v168
  %225 = vmatprep.subr.mxu0 0.0
  %226 = vmatpush1.msra.mxu0 %v169
  %227 = vmatprep.subr.mxu0 0.0
  %228 = vmatpush1.msra.mxu0 %v170
  %229 = vmatprep.subr.mxu0 0.0
  %230 = vmatpush1.msra.mxu0 %v171
  %231 = vmatprep.subr.mxu0 0.0
  %232 = vmatpush1.msra.mxu0 %v172
  %233 = vmatprep.subr.mxu0 0.0
  %234 = vmatpush1.msra.mxu0 %v173
  %235 = vmatprep.subr.mxu0 0.0
  %236 = vmatpush1.msra.mxu0 %v174
  %237 = vmatprep.subr.mxu0 0.0
  %238 = vmatpush1.msra.mxu0 %v175
  %239 = vmatprep.subr.mxu0 0.0
  %240 = vmatpush1.msra.mxu0 %v176
  %v241 = vand.u32 %v9, 4294901760
  %v242 = vsub.f32 %v9, %v241
  %v243 = vand.u32 %v242, 4294901760
  %v244 = vsub.f32 %v242, %v243
  %v245 = vand.u32 %v244, 4294901760
  %246 = vmatprep.mubr.f32.mxu0 %v245
  %v247 = vand.u32 %v8, 4294901760
  %v248 = vsub.f32 %v8, %v247
  %v249 = vand.u32 %v248, 4294901760
  %v250 = vsub.f32 %v248, %v249
  %v251 = vand.u32 %v250, 4294901760
  %252 = vmatmul.mubr.f32.gmra.mrb[0].mxu0 %v251
  %v253 = vpop.f32.mrb[0].mxu0
  %v254 = vadd.f32 0.0, %v253
  %v255 = vpop.f32.mrb[0].mxu0
  %v256 = vand.u32 %v11, 4294901760
  %v257 = vsub.f32 %v11, %v256
  %v258 = vand.u32 %v257, 4294901760
  %v259 = vsub.f32 %v257, %v258
  %v260 = vand.u32 %v259, 4294901760
  %261 = vmatprep.mubr.f32.mxu0 %v260
  %v262 = vand.u32 %v10, 4294901760
  %v263 = vsub.f32 %v10, %v262
  %v264 = vand.u32 %v263, 4294901760
  %v265 = vsub.f32 %v263, %v264
  %v266 = vand.u32 %v265, 4294901760
  %267 = vmatmul.mubr.f32.gmra.mrb[0].mxu0 %v266
  %v268 = vpop.f32.mrb[0].mxu0
  %v269 = vadd.f32 0.0, %v268
  %v270 = vpop.f32.mrb[0].mxu0
  %271 = vdwg.mxu0
  %272 = vmatprep.subr.mxu0 0.0
  %v273 = vsub.f32 %v145, %v145
  %v274 = vand.u32 %v273, 4294901760
  %v275 = vsub.f32 %v273, %v274
  %v276 = vand.u32 %v275, 4294901760
  %277 = vmatpush1.msra.mxu0 %v276
  %278 = vmatprep.subr.mxu0 0.0
  %v279 = vsub.f32 %v146, %v146
  %v280 = vand.u32 %v279, 4294901760
  %v281 = vsub.f32 %v279, %v280
  %v282 = vand.u32 %v281, 4294901760
  %283 = vmatpush1.msra.mxu0 %v282
  %284 = vmatprep.subr.mxu0 0.0
  %v285 = vsub.f32 %v147, %v147
  %v286 = vand.u32 %v285, 4294901760
  %v287 = vsub.f32 %v285, %v286
  %v288 = vand.u32 %v287, 4294901760
  %289 = vmatpush1.msra.mxu0 %v288
  %290 = vmatprep.subr.mxu0 0.0
  %v291 = vsub.f32 %v148, %v148
  %v292 = vand.u32 %v291, 4294901760
  %v293 = vsub.f32 %v291, %v292
  %v294 = vand.u32 %v293, 4294901760
  %295 = vmatpush1.msra.mxu0 %v294
  %296 = vmatprep.subr.mxu0 0.0
  %v297 = vsub.f32 %v149, %v149
  %v298 = vand.u32 %v297, 4294901760
  %v299 = vsub.f32 %v297, %v298
  %v300 = vand.u32 %v299, 4294901760
  %301 = vmatpush1.msra.mxu0 %v300
  %302 = vmatprep.subr.mxu0 0.0
  %v303 = vsub.f32 %v150, %v150
  %v304 = vand.u32 %v303, 4294901760
  %v305 = vsub.f32 %v303, %v304
  %v306 = vand.u32 %v305, 4294901760
  %307 = vmatpush1.msra.mxu0 %v306
  %308 = vmatprep.subr.mxu0 0.0
  %v309 = vsub.f32 %v151, %v151
  %v310 = vand.u32 %v309, 4294901760
  %v311 = vsub.f32 %v309, %v310
  %v312 = vand.u32 %v311, 4294901760
  %313 = vmatpush1.msra.mxu0 %v312
  %314 = vmatprep.subr.mxu0 0.0
  %v315 = vsub.f32 %v152, %v152
  %v316 = vand.u32 %v315, 4294901760
  %v317 = vsub.f32 %v315, %v316
  %v318 = vand.u32 %v317, 4294901760
  %319 = vmatpush1.msra.mxu0 %v318
  %320 = vmatprep.subr.mxu0 0.0
  %v321 = vsub.f32 %v153, %v153
  %v322 = vand.u32 %v321, 4294901760
  %v323 = vsub.f32 %v321, %v322
  %v324 = vand.u32 %v323, 4294901760
  %325 = vmatpush1.msra.mxu0 %v324
  %326 = vmatprep.subr.mxu0 0.0
  %v327 = vsub.f32 %v154, %v154
  %v328 = vand.u32 %v327, 4294901760
  %v329 = vsub.f32 %v327, %v328
  %v330 = vand.u32 %v329, 4294901760
  %331 = vmatpush1.msra.mxu0 %v330
  %332 = vmatprep.subr.mxu0 0.0
  %v333 = vsub.f32 %v155, %v155
  %v334 = vand.u32 %v333, 4294901760
  %v335 = vsub.f32 %v333, %v334
  %v336 = vand.u32 %v335, 4294901760
  %337 = vmatpush1.msra.mxu0 %v336
  %338 = vmatprep.subr.mxu0 0.0
  %v339 = vsub.f32 %v156, %v156
  %v340 = vand.u32 %v339, 4294901760
  %v341 = vsub.f32 %v339, %v340
  %v342 = vand.u32 %v341, 4294901760
  %343 = vmatpush1.msra.mxu0 %v342
  %344 = vmatprep.subr.mxu0 0.0
  %v345 = vsub.f32 %v157, %v157
  %v346 = vand.u32 %v345, 4294901760
  %v347 = vsub.f32 %v345, %v346
  %v348 = vand.u32 %v347, 4294901760
  %349 = vmatpush1.msra.mxu0 %v348
  %350 = vmatprep.subr.mxu0 0.0
  %v351 = vsub.f32 %v158, %v158
  %v352 = vand.u32 %v351, 4294901760
  %v353 = vsub.f32 %v351, %v352
  %v354 = vand.u32 %v353, 4294901760
  %355 = vmatpush1.msra.mxu0 %v354
  %356 = vmatprep.subr.mxu0 0.0
  %v357 = vsub.f32 %v159, %v159
  %v358 = vand.u32 %v357, 4294901760
  %v359 = vsub.f32 %v357, %v358
  %v360 = vand.u32 %v359, 4294901760
  %361 = vmatpush1.msra.mxu0 %v360
  %362 = vmatprep.subr.mxu0 0.0
  %v363 = vsub.f32 %v160, %v160
  %v364 = vand.u32 %v363, 4294901760
  %v365 = vsub.f32 %v363, %v364
  %v366 = vand.u32 %v365, 4294901760
  %367 = vmatpush1.msra.mxu0 %v366
  %368 = vmatprep.subr.mxu0 0.0
  %v369 = vsub.f32 %v161, %v161
  %v370 = vand.u32 %v369, 4294901760
  %v371 = vsub.f32 %v369, %v370
  %v372 = vand.u32 %v371, 4294901760
  %373 = vmatpush1.msra.mxu0 %v372
  %374 = vmatprep.subr.mxu0 0.0
  %v375 = vsub.f32 %v162, %v162
  %v376 = vand.u32 %v375, 4294901760
  %v377 = vsub.f32 %v375, %v376
  %v378 = vand.u32 %v377, 4294901760
  %379 = vmatpush1.msra.mxu0 %v378
  %380 = vmatprep.subr.mxu0 0.0
  %v381 = vsub.f32 %v163, %v163
  %v382 = vand.u32 %v381, 4294901760
  %v383 = vsub.f32 %v381, %v382
  %v384 = vand.u32 %v383, 4294901760
  %385 = vmatpush1.msra.mxu0 %v384
  %386 = vmatprep.subr.mxu0 0.0
  %v387 = vsub.f32 %v164, %v164
  %v388 = vand.u32 %v387, 4294901760
  %v389 = vsub.f32 %v387, %v388
  %v390 = vand.u32 %v389, 4294901760
  %391 = vmatpush1.msra.mxu0 %v390
  %392 = vmatprep.subr.mxu0 0.0
  %v393 = vsub.f32 %v165, %v165
  %v394 = vand.u32 %v393, 4294901760
  %v395 = vsub.f32 %v393, %v394
  %v396 = vand.u32 %v395, 4294901760
  %397 = vmatpush1.msra.mxu0 %v396
  %398 = vmatprep.subr.mxu0 0.0
  %v399 = vsub.f32 %v166, %v166
  %v400 = vand.u32 %v399, 4294901760
  %v401 = vsub.f32 %v399, %v400
  %v402 = vand.u32 %v401, 4294901760
  %403 = vmatpush1.msra.mxu0 %v402
  %404 = vmatprep.subr.mxu0 0.0
  %v405 = vsub.f32 %v167, %v167
  %v406 = vand.u32 %v405, 4294901760
  %v407 = vsub.f32 %v405, %v406
  %v408 = vand.u32 %v407, 4294901760
  %409 = vmatpush1.msra.mxu0 %v408
  %410 = vmatprep.subr.mxu0 0.0
  %v411 = vsub.f32 %v168, %v168
  %v412 = vand.u32 %v411, 4294901760
  %v413 = vsub.f32 %v411, %v412
  %v414 = vand.u32 %v413, 4294901760
  %415 = vmatpush1.msra.mxu0 %v414
  %416 = vmatprep.subr.mxu0 0.0
  %v417 = vsub.f32 %v169, %v169
  %v418 = vand.u32 %v417, 4294901760
  %v419 = vsub.f32 %v417, %v418
  %v420 = vand.u32 %v419, 4294901760
  %421 = vmatpush1.msra.mxu0 %v420
  %422 = vmatprep.subr.mxu0 0.0
  %v423 = vsub.f32 %v170, %v170
  %v424 = vand.u32 %v423, 4294901760
  %v425 = vsub.f32 %v423, %v424
  %v426 = vand.u32 %v425, 4294901760
  %427 = vmatpush1.msra.mxu0 %v426
  %428 = vmatprep.subr.mxu0 0.0
  %v429 = vsub.f32 %v171, %v171
  %v430 = vand.u32 %v429, 4294901760
  %v431 = vsub.f32 %v429, %v430
  %v432 = vand.u32 %v431, 4294901760
  %433 = vmatpush1.msra.mxu0 %v432
  %434 = vmatprep.subr.mxu0 0.0
  %v435 = vsub.f32 %v172, %v172
  %v436 = vand.u32 %v435, 4294901760
  %v437 = vsub.f32 %v435, %v436
  %v438 = vand.u32 %v437, 4294901760
  %439 = vmatpush1.msra.mxu0 %v438
  %440 = vmatprep.subr.mxu0 0.0
  %v441 = vsub.f32 %v173, %v173
  %v442 = vand.u32 %v441, 4294901760
  %v443 = vsub.f32 %v441, %v442
  %v444 = vand.u32 %v443, 4294901760
  %445 = vmatpush1.msra.mxu0 %v444
  %446 = vmatprep.subr.mxu0 0.0
  %v447 = vsub.f32 %v174, %v174
  %v448 = vand.u32 %v447, 4294901760
  %v449 = vsub.f32 %v447, %v448
  %v450 = vand.u32 %v449, 4294901760
  %451 = vmatpush1.msra.mxu0 %v450
  %452 = vmatprep.subr.mxu0 0.0
  %v453 = vsub.f32 %v175, %v175
  %v454 = vand.u32 %v453, 4294901760
  %v455 = vsub.f32 %v453, %v454
  %v456 = vand.u32 %v455, 4294901760
  %457 = vmatpush1.msra.mxu0 %v456
  %458 = vmatprep.subr.mxu0 0.0
  %v459 = vsub.f32 %v176, %v176
  %v460 = vand.u32 %v459, 4294901760
  %v461 = vsub.f32 %v459, %v460
  %v462 = vand.u32 %v461, 4294901760
  %463 = vmatpush1.msra.mxu0 %v462
  %v464 = vand.u32 %v9, 4294901760
  %465 = vmatprep.mubr.f32.mxu0 %v464
  %v466 = vand.u32 %v8, 4294901760
  %467 = vmatmul.mubr.f32.gmra.mrb[0].mxu0 %v466
  %v468 = vpop.f32.mrb[0].mxu0
  %v469 = vadd.f32 %v254, %v468
  %v470 = vpop.f32.mrb[0].mxu0
  %v471 = vand.u32 %v11, 4294901760
  %472 = vmatprep.mubr.f32.mxu0 %v471
  %v473 = vand.u32 %v10, 4294901760
  %474 = vmatmul.mubr.f32.gmra.mrb[0].mxu0 %v473
  %v475 = vpop.f32.mrb[0].mxu0
  %v476 = vadd.f32 %v269, %v475
  %v477 = vpop.f32.mrb[0].mxu0
  %478 = vdwg.mxu0
  %479 = vmatprep.subr.mxu0 0.0
  %v480 = vsub.f32 %v145, %v145
  %481 = vmatpush1.msra.mxu0 %v480
  %482 = vmatprep.subr.mxu0 0.0
  %v483 = vsub.f32 %v146, %v146
  %484 = vmatpush1.msra.mxu0 %v483
  %485 = vmatprep.subr.mxu0 0.0
  %v486 = vsub.f32 %v147, %v147
  %487 = vmatpush1.msra.mxu0 %v486
  %488 = vmatprep.subr.mxu0 0.0
  %v489 = vsub.f32 %v148, %v148
  %490 = vmatpush1.msra.mxu0 %v489
  %491 = vmatprep.subr.mxu0 0.0
  %v492 = vsub.f32 %v149, %v149
  %493 = vmatpush1.msra.mxu0 %v492
  %494 = vmatprep.subr.mxu0 0.0
  %v495 = vsub.f32 %v150, %v150
  %496 = vmatpush1.msra.mxu0 %v495
  %497 = vmatprep.subr.mxu0 0.0
  %v498 = vsub.f32 %v151, %v151
  %499 = vmatpush1.msra.mxu0 %v498
  %500 = vmatprep.subr.mxu0 0.0
  %v501 = vsub.f32 %v152, %v152
  %502 = vmatpush1.msra.mxu0 %v501
  %503 = vmatprep.subr.mxu0 0.0
  %v504 = vsub.f32 %v153, %v153
  %505 = vmatpush1.msra.mxu0 %v504
  %506 = vmatprep.subr.mxu0 0.0
  %v507 = vsub.f32 %v154, %v154
  %508 = vmatpush1.msra.mxu0 %v507
  %509 = vmatprep.subr.mxu0 0.0
  %v510 = vsub.f32 %v155, %v155
  %511 = vmatpush1.msra.mxu0 %v510
  %512 = vmatprep.subr.mxu0 0.0
  %v513 = vsub.f32 %v156, %v156
  %514 = vmatpush1.msra.mxu0 %v513
  %515 = vmatprep.subr.mxu0 0.0
  %v516 = vsub.f32 %v157, %v157
  %517 = vmatpush1.msra.mxu0 %v516
  %518 = vmatprep.subr.mxu0 0.0
  %v519 = vsub.f32 %v158, %v158
  %520 = vmatpush1.msra.mxu0 %v519
  %521 = vmatprep.subr.mxu0 0.0
  %v522 = vsub.f32 %v159, %v159
  %523 = vmatpush1.msra.mxu0 %v522
  %524 = vmatprep.subr.mxu0 0.0
  %v525 = vsub.f32 %v160, %v160
  %526 = vmatpush1.msra.mxu0 %v525
  %527 = vmatprep.subr.mxu0 0.0
  %v528 = vsub.f32 %v161, %v161
  %529 = vmatpush1.msra.mxu0 %v528
  %530 = vmatprep.subr.mxu0 0.0
  %v531 = vsub.f32 %v162, %v162
  %532 = vmatpush1.msra.mxu0 %v531
  %533 = vmatprep.subr.mxu0 0.0
  %v534 = vsub.f32 %v163, %v163
  %535 = vmatpush1.msra.mxu0 %v534
  %536 = vmatprep.subr.mxu0 0.0
  %v537 = vsub.f32 %v164, %v164
  %538 = vmatpush1.msra.mxu0 %v537
  %539 = vmatprep.subr.mxu0 0.0
  %v540 = vsub.f32 %v165, %v165
  %541 = vmatpush1.msra.mxu0 %v540
  %542 = vmatprep.subr.mxu0 0.0
  %v543 = vsub.f32 %v166, %v166
  %544 = vmatpush1.msra.mxu0 %v543
  %545 = vmatprep.subr.mxu0 0.0
  %v546 = vsub.f32 %v167, %v167
  %547 = vmatpush1.msra.mxu0 %v546
  %548 = vmatprep.subr.mxu0 0.0
  %v549 = vsub.f32 %v168, %v168
  %550 = vmatpush1.msra.mxu0 %v549
  %551 = vmatprep.subr.mxu0 0.0
  %v552 = vsub.f32 %v169, %v169
  %553 = vmatpush1.msra.mxu0 %v552
  %554 = vmatprep.subr.mxu0 0.0
  %v555 = vsub.f32 %v170, %v170
  %556 = vmatpush1.msra.mxu0 %v555
  %557 = vmatprep.subr.mxu0 0.0
  %v558 = vsub.f32 %v171, %v171
  %559 = vmatpush1.msra.mxu0 %v558
  %560 = vmatprep.subr.mxu0 0.0
  %v561 = vsub.f32 %v172, %v172
  %562 = vmatpush1.msra.mxu0 %v561
  %563 = vmatprep.subr.mxu0 0.0
  %v564 = vsub.f32 %v173, %v173
  %565 = vmatpush1.msra.mxu0 %v564
  %566 = vmatprep.subr.mxu0 0.0
  %v567 = vsub.f32 %v174, %v174
  %568 = vmatpush1.msra.mxu0 %v567
  %569 = vmatprep.subr.mxu0 0.0
  %v570 = vsub.f32 %v175, %v175
  %571 = vmatpush1.msra.mxu0 %v570
  %572 = vmatprep.subr.mxu0 0.0
  %v573 = vsub.f32 %v176, %v176
  %574 = vmatpush1.msra.mxu0 %v573
  %v575 = vand.u32 %v9, 4294901760
  %v576 = vsub.f32 %v9, %v575
  %577 = vmatprep.mubr.f32.mxu0 %v576
  %v578 = vand.u32 %v8, 4294901760
  %v579 = vsub.f32 %v8, %v578
  %580 = vmatmul.mubr.f32.gmra.mrb[0].mxu0 %v579
  %v581 = vpop.f32.mrb[0].mxu0
  %v582 = vadd.f32 %v469, %v581
  %v583 = vpop.f32.mrb[0].mxu0
  %v584 = vand.u32 %v11, 4294901760
  %v585 = vsub.f32 %v11, %v584
  %586 = vmatprep.mubr.f32.mxu0 %v585
  %v587 = vand.u32 %v10, 4294901760
  %v588 = vsub.f32 %v10, %v587
  %589 = vmatmul.mubr.f32.gmra.mrb[0].mxu0 %v588
  %v590 = vpop.f32.mrb[0].mxu0
  %v591 = vadd.f32 %v476, %v590
  %v592 = vpop.f32.mrb[0].mxu0
  %593 = vdwg.mxu0
  %594 = vmatprep.subr.mxu0 0.0
  %595 = vmatpush1.msra.mxu0 %v145
  %596 = vmatprep.subr.mxu0 0.0
  %597 = vmatpush1.msra.mxu0 %v146
  %598 = vmatprep.subr.mxu0 0.0
  %599 = vmatpush1.msra.mxu0 %v147
  %600 = vmatprep.subr.mxu0 0.0
  %601 = vmatpush1.msra.mxu0 %v148
  %602 = vmatprep.subr.mxu0 0.0
  %603 = vmatpush1.msra.mxu0 %v149
  %604 = vmatprep.subr.mxu0 0.0
  %605 = vmatpush1.msra.mxu0 %v150
  %606 = vmatprep.subr.mxu0 0.0
  %607 = vmatpush1.msra.mxu0 %v151
  %608 = vmatprep.subr.mxu0 0.0
  %609 = vmatpush1.msra.mxu0 %v152
  %610 = vmatprep.subr.mxu0 0.0
  %611 = vmatpush1.msra.mxu0 %v153
  %612 = vmatprep.subr.mxu0 0.0
  %613 = vmatpush1.msra.mxu0 %v154
  %614 = vmatprep.subr.mxu0 0.0
  %615 = vmatpush1.msra.mxu0 %v155
  %616 = vmatprep.subr.mxu0 0.0
  %617 = vmatpush1.msra.mxu0 %v156
  %618 = vmatprep.subr.mxu0 0.0
  %619 = vmatpush1.msra.mxu0 %v157
  %620 = vmatprep.subr.mxu0 0.0
  %621 = vmatpush1.msra.mxu0 %v158
  %622 = vmatprep.subr.mxu0 0.0
  %623 = vmatpush1.msra.mxu0 %v159
  %624 = vmatprep.subr.mxu0 0.0
  %625 = vmatpush1.msra.mxu0 %v160
  %626 = vmatprep.subr.mxu0 0.0
  %627 = vmatpush1.msra.mxu0 %v161
  %628 = vmatprep.subr.mxu0 0.0
  %629 = vmatpush1.msra.mxu0 %v162
  %630 = vmatprep.subr.mxu0 0.0
  %631 = vmatpush1.msra.mxu0 %v163
  %632 = vmatprep.subr.mxu0 0.0
  %633 = vmatpush1.msra.mxu0 %v164
  %634 = vmatprep.subr.mxu0 0.0
  %635 = vmatpush1.msra.mxu0 %v165
  %636 = vmatprep.subr.mxu0 0.0
  %637 = vmatpush1.msra.mxu0 %v166
  %638 = vmatprep.subr.mxu0 0.0
  %639 = vmatpush1.msra.mxu0 %v167
  %640 = vmatprep.subr.mxu0 0.0
  %641 = vmatpush1.msra.mxu0 %v168
  %642 = vmatprep.subr.mxu0 0.0
  %643 = vmatpush1.msra.mxu0 %v169
  %644 = vmatprep.subr.mxu0 0.0
  %645 = vmatpush1.msra.mxu0 %v170
  %646 = vmatprep.subr.mxu0 0.0
  %647 = vmatpush1.msra.mxu0 %v171
  %648 = vmatprep.subr.mxu0 0.0
  %649 = vmatpush1.msra.mxu0 %v172
  %650 = vmatprep.subr.mxu0 0.0
  %651 = vmatpush1.msra.mxu0 %v173
  %652 = vmatprep.subr.mxu0 0.0
  %653 = vmatpush1.msra.mxu0 %v174
  %654 = vmatprep.subr.mxu0 0.0
  %655 = vmatpush1.msra.mxu0 %v175
  %656 = vmatprep.subr.mxu0 0.0
  %657 = vmatpush1.msra.mxu0 %v176
  %v658 = vand.u32 %v9, 4294901760
  %v659 = vsub.f32 %v9, %v658
  %v660 = vand.u32 %v659, 4294901760
  %661 = vmatprep.mubr.f32.mxu0 %v660
  %v662 = vand.u32 %v8, 4294901760
  %v663 = vsub.f32 %v8, %v662
  %v664 = vand.u32 %v663, 4294901760
  %665 = vmatmul.mubr.f32.gmra.mrb[0].mxu0 %v664
  %v666 = vpop.f32.mrb[0].mxu0
  %v667 = vadd.f32 %v582, %v666
  %v668 = vpop.f32.mrb[0].mxu0
  %v669 = vand.u32 %v11, 4294901760
  %v670 = vsub.f32 %v11, %v669
  %v671 = vand.u32 %v670, 4294901760
  %672 = vmatprep.mubr.f32.mxu0 %v671
  %v673 = vand.u32 %v10, 4294901760
  %v674 = vsub.f32 %v10, %v673
  %v675 = vand.u32 %v674, 4294901760
  %676 = vmatmul.mubr.f32.gmra.mrb[0].mxu0 %v675
  %v677 = vpop.f32.mrb[0].mxu0
  %v678 = vadd.f32 %v591, %v677
  %v679 = vpop.f32.mrb[0].mxu0
  %680 = vdwg.mxu0
  %681 = vmatprep.subr.mxu0 0.0
  %v682 = vsub.f32 %v145, %v145
  %v683 = vand.u32 %v682, 4294901760
  %684 = vmatpush1.msra.mxu0 %v683
  %685 = vmatprep.subr.mxu0 0.0
  %v686 = vsub.f32 %v146, %v146
  %v687 = vand.u32 %v686, 4294901760
  %688 = vmatpush1.msra.mxu0 %v687
  %689 = vmatprep.subr.mxu0 0.0
  %v690 = vsub.f32 %v147, %v147
  %v691 = vand.u32 %v690, 4294901760
  %692 = vmatpush1.msra.mxu0 %v691
  %693 = vmatprep.subr.mxu0 0.0
  %v694 = vsub.f32 %v148, %v148
  %v695 = vand.u32 %v694, 4294901760
  %696 = vmatpush1.msra.mxu0 %v695
  %697 = vmatprep.subr.mxu0 0.0
  %v698 = vsub.f32 %v149, %v149
  %v699 = vand.u32 %v698, 4294901760
  %700 = vmatpush1.msra.mxu0 %v699
  %701 = vmatprep.subr.mxu0 0.0
  %v702 = vsub.f32 %v150, %v150
  %v703 = vand.u32 %v702, 4294901760
  %704 = vmatpush1.msra.mxu0 %v703
  %705 = vmatprep.subr.mxu0 0.0
  %v706 = vsub.f32 %v151, %v151
  %v707 = vand.u32 %v706, 4294901760
  %708 = vmatpush1.msra.mxu0 %v707
  %709 = vmatprep.subr.mxu0 0.0
  %v710 = vsub.f32 %v152, %v152
  %v711 = vand.u32 %v710, 4294901760
  %712 = vmatpush1.msra.mxu0 %v711
  %713 = vmatprep.subr.mxu0 0.0
  %v714 = vsub.f32 %v153, %v153
  %v715 = vand.u32 %v714, 4294901760
  %716 = vmatpush1.msra.mxu0 %v715
  %717 = vmatprep.subr.mxu0 0.0
  %v718 = vsub.f32 %v154, %v154
  %v719 = vand.u32 %v718, 4294901760
  %720 = vmatpush1.msra.mxu0 %v719
  %721 = vmatprep.subr.mxu0 0.0
  %v722 = vsub.f32 %v155, %v155
  %v723 = vand.u32 %v722, 4294901760
  %724 = vmatpush1.msra.mxu0 %v723
  %725 = vmatprep.subr.mxu0 0.0
  %v726 = vsub.f32 %v156, %v156
  %v727 = vand.u32 %v726, 4294901760
  %728 = vmatpush1.msra.mxu0 %v727
  %729 = vmatprep.subr.mxu0 0.0
  %v730 = vsub.f32 %v157, %v157
  %v731 = vand.u32 %v730, 4294901760
  %732 = vmatpush1.msra.mxu0 %v731
  %733 = vmatprep.subr.mxu0 0.0
  %v734 = vsub.f32 %v158, %v158
  %v735 = vand.u32 %v734, 4294901760
  %736 = vmatpush1.msra.mxu0 %v735
  %737 = vmatprep.subr.mxu0 0.0
  %v738 = vsub.f32 %v159, %v159
  %v739 = vand.u32 %v738, 4294901760
  %740 = vmatpush1.msra.mxu0 %v739
  %741 = vmatprep.subr.mxu0 0.0
  %v742 = vsub.f32 %v160, %v160
  %v743 = vand.u32 %v742, 4294901760
  %744 = vmatpush1.msra.mxu0 %v743
  %745 = vmatprep.subr.mxu0 0.0
  %v746 = vsub.f32 %v161, %v161
  %v747 = vand.u32 %v746, 4294901760
  %748 = vmatpush1.msra.mxu0 %v747
  %749 = vmatprep.subr.mxu0 0.0
  %v750 = vsub.f32 %v162, %v162
  %v751 = vand.u32 %v750, 4294901760
  %752 = vmatpush1.msra.mxu0 %v751
  %753 = vmatprep.subr.mxu0 0.0
  %v754 = vsub.f32 %v163, %v163
  %v755 = vand.u32 %v754, 4294901760
  %756 = vmatpush1.msra.mxu0 %v755
  %757 = vmatprep.subr.mxu0 0.0
  %v758 = vsub.f32 %v164, %v164
  %v759 = vand.u32 %v758, 4294901760
  %760 = vmatpush1.msra.mxu0 %v759
  %761 = vmatprep.subr.mxu0 0.0
  %v762 = vsub.f32 %v165, %v165
  %v763 = vand.u32 %v762, 4294901760
  %764 = vmatpush1.msra.mxu0 %v763
  %765 = vmatprep.subr.mxu0 0.0
  %v766 = vsub.f32 %v166, %v166
  %v767 = vand.u32 %v766, 4294901760
  %768 = vmatpush1.msra.mxu0 %v767
  %769 = vmatprep.subr.mxu0 0.0
  %v770 = vsub.f32 %v167, %v167
  %v771 = vand.u32 %v770, 4294901760
  %772 = vmatpush1.msra.mxu0 %v771
  %773 = vmatprep.subr.mxu0 0.0
  %v774 = vsub.f32 %v168, %v168
  %v775 = vand.u32 %v774, 4294901760
  %776 = vmatpush1.msra.mxu0 %v775
  %777 = vmatprep.subr.mxu0 0.0
  %v778 = vsub.f32 %v169, %v169
  %v779 = vand.u32 %v778, 4294901760
  %780 = vmatpush1.msra.mxu0 %v779
  %781 = vmatprep.subr.mxu0 0.0
  %v782 = vsub.f32 %v170, %v170
  %v783 = vand.u32 %v782, 4294901760
  %784 = vmatpush1.msra.mxu0 %v783
  %785 = vmatprep.subr.mxu0 0.0
  %v786 = vsub.f32 %v171, %v171
  %v787 = vand.u32 %v786, 4294901760
  %788 = vmatpush1.msra.mxu0 %v787
  %789 = vmatprep.subr.mxu0 0.0
  %v790 = vsub.f32 %v172, %v172
  %v791 = vand.u32 %v790, 4294901760
  %792 = vmatpush1.msra.mxu0 %v791
  %793 = vmatprep.subr.mxu0 0.0
  %v794 = vsub.f32 %v173, %v173
  %v795 = vand.u32 %v794, 4294901760
  %796 = vmatpush1.msra.mxu0 %v795
  %797 = vmatprep.subr.mxu0 0.0
  %v798 = vsub.f32 %v174, %v174
  %v799 = vand.u32 %v798, 4294901760
  %800 = vmatpush1.msra.mxu0 %v799
  %801 = vmatprep.subr.mxu0 0.0
  %v802 = vsub.f32 %v175, %v175
  %v803 = vand.u32 %v802, 4294901760
  %804 = vmatpush1.msra.mxu0 %v803
  %805 = vmatprep.subr.mxu0 0.0
  %v806 = vsub.f32 %v176, %v176
  %v807 = vand.u32 %v806, 4294901760
  %808 = vmatpush1.msra.mxu0 %v807
  %v809 = vand.u32 %v9, 4294901760
  %810 = vmatprep.mubr.f32.mxu0 %v809
  %v811 = vand.u32 %v8, 4294901760
  %812 = vmatmul.mubr.f32.gmra.mrb[0].mxu0 %v811
  %v813 = vpop.f32.mrb[0].mxu0
  %v814 = vadd.f32 %v667, %v813
  %v815 = vpop.f32.mrb[0].mxu0
  %v816 = vand.u32 %v11, 4294901760
  %817 = vmatprep.mubr.f32.mxu0 %v816
  %v818 = vand.u32 %v10, 4294901760
  %819 = vmatmul.mubr.f32.gmra.mrb[0].mxu0 %v818
  %v820 = vpop.f32.mrb[0].mxu0
  %v821 = vadd.f32 %v678, %v820
  %v822 = vpop.f32.mrb[0].mxu0
  %823 = vdwg.mxu0
  %824 = vmatprep.subr.mxu0 0.0
  %825 = vmatpush1.msra.mxu0 %v145
  %826 = vmatprep.subr.mxu0 0.0
  %827 = vmatpush1.msra.mxu0 %v146
  %828 = vmatprep.subr.mxu0 0.0
  %829 = vmatpush1.msra.mxu0 %v147
  %830 = vmatprep.subr.mxu0 0.0
  %831 = vmatpush1.msra.mxu0 %v148
  %832 = vmatprep.subr.mxu0 0.0
  %833 = vmatpush1.msra.mxu0 %v149
  %834 = vmatprep.subr.mxu0 0.0
  %835 = vmatpush1.msra.mxu0 %v150
  %836 = vmatprep.subr.mxu0 0.0
  %837 = vmatpush1.msra.mxu0 %v151
  %838 = vmatprep.subr.mxu0 0.0
  %839 = vmatpush1.msra.mxu0 %v152
  %840 = vmatprep.subr.mxu0 0.0
  %841 = vmatpush1.msra.mxu0 %v153
  %842 = vmatprep.subr.mxu0 0.0
  %843 = vmatpush1.msra.mxu0 %v154
  %844 = vmatprep.subr.mxu0 0.0
  %845 = vmatpush1.msra.mxu0 %v155
  %846 = vmatprep.subr.mxu0 0.0
  %847 = vmatpush1.msra.mxu0 %v156
  %848 = vmatprep.subr.mxu0 0.0
  %849 = vmatpush1.msra.mxu0 %v157
  %850 = vmatprep.subr.mxu0 0.0
  %851 = vmatpush1.msra.mxu0 %v158
  %852 = vmatprep.subr.mxu0 0.0
  %853 = vmatpush1.msra.mxu0 %v159
  %854 = vmatprep.subr.mxu0 0.0
  %855 = vmatpush1.msra.mxu0 %v160
  %856 = vmatprep.subr.mxu0 0.0
  %857 = vmatpush1.msra.mxu0 %v161
  %858 = vmatprep.subr.mxu0 0.0
  %859 = vmatpush1.msra.mxu0 %v162
  %860 = vmatprep.subr.mxu0 0.0
  %861 = vmatpush1.msra.mxu0 %v163
  %862 = vmatprep.subr.mxu0 0.0
  %863 = vmatpush1.msra.mxu0 %v164
  %864 = vmatprep.subr.mxu0 0.0
  %865 = vmatpush1.msra.mxu0 %v165
  %866 = vmatprep.subr.mxu0 0.0
  %867 = vmatpush1.msra.mxu0 %v166
  %868 = vmatprep.subr.mxu0 0.0
  %869 = vmatpush1.msra.mxu0 %v167
  %870 = vmatprep.subr.mxu0 0.0
  %871 = vmatpush1.msra.mxu0 %v168
  %872 = vmatprep.subr.mxu0 0.0
  %873 = vmatpush1.msra.mxu0 %v169
  %874 = vmatprep.subr.mxu0 0.0
  %875 = vmatpush1.msra.mxu0 %v170
  %876 = vmatprep.subr.mxu0 0.0
  %877 = vmatpush1.msra.mxu0 %v171
  %878 = vmatprep.subr.mxu0 0.0
  %879 = vmatpush1.msra.mxu0 %v172
  %880 = vmatprep.subr.mxu0 0.0
  %881 = vmatpush1.msra.mxu0 %v173
  %882 = vmatprep.subr.mxu0 0.0
  %883 = vmatpush1.msra.mxu0 %v174
  %884 = vmatprep.subr.mxu0 0.0
  %885 = vmatpush1.msra.mxu0 %v175
  %886 = vmatprep.subr.mxu0 0.0
  %887 = vmatpush1.msra.mxu0 %v176
  %v888 = vand.u32 %v9, 4294901760
  %889 = vmatprep.mubr.f32.mxu0 %v888
  %v890 = vand.u32 %v8, 4294901760
  %891 = vmatmul.mubr.f32.gmra.mrb[0].mxu0 %v890
  %v892 = vpop.f32.mrb[0].mxu0
  %v893 = vadd.f32 %v814, %v892
  %v894 = vpop.f32.mrb[0].mxu0
  %v895 = vand.u32 %v11, 4294901760
  %896 = vmatprep.mubr.f32.mxu0 %v895
  %v897 = vand.u32 %v10, 4294901760
  %898 = vmatmul.mubr.f32.gmra.mrb[0].mxu0 %v897
  %v899 = vpop.f32.mrb[0].mxu0
  %v900 = vadd.f32 %v821, %v899
  %v901 = vpop.f32.mrb[0].mxu0
  %902 = vdwg.mxu0
  %v903 = vxor.u32 %v893, 2147483648
  %v904 = vxor.u32 %v900, 2147483648
  %v905 = vmul.f32 %v903, 1.442695
  %v906 = vpow.pop %v905
  %v907 = vmul.f32 %v904, 1.442695
  %v908 = vpow.pop %v907
  %v909 = vadd.f32 %v906, 1.0
  %v910 = vadd.f32 %v908, 1.0
  %v911 = vrcp.pop %v909
  %v912 = vmul.f32 1.0, %v911
  %v913 = vrcp.pop %v910
  %v914 = vmul.f32 1.0, %v913
  %915 = vst [vmem:[%s1] sm:$0xff] %v912
  %916 = vst [vmem:[%s1 + $0x8] sm:$0xff] %v914
  // Predicated region
  $region6: #{modsigmoid.1} parent=0 // pred_check
    _
  $region7: #{modsigmoid.1} parent=0 // pred_check_branch
    %918 = sbr.rel (0) target = $region9
  $region8: #{modsigmoid.1} parent=0 // pred_region
    _
  $region9: #{modsigmoid.1} parent=0 // pred_fallthru
    _
  // Predicated region
  $region10: #{modsigmoid.1} parent=0 // pred_check
    _
  $region11: #{modsigmoid.1} parent=0 // pred_check_branch
    %920 = sbr.rel (0) target = $region13
  $region12: #{modsigmoid.1} parent=0 // pred_region
    _
  $region13: #{modsigmoid.1} parent=0 // pred_fallthru
    _

</llo_original>
